<compile_context>
chip_gen: v5e
topology: v5e:2x2
jax: 0.10.0
libtpu: 0.0.40
codegen_flags: <defaults>
</compile_context>

<pallas_src>
import functools

import jax
import jax.numpy as jnp
from jax import lax
from jax.experimental import pallas as pl
from jax.experimental.pallas import tpu as pltpu


def _round_up(x: int, m: int) -> int:
    return ((x + m - 1) // m) * m


def _linear_kernel_f32(x_ref, w_ref, b_ref, o_ref):
    # x_ref: (tm, tk); w_ref: (tn, tk) in PyTorch (N, K) layout (no transpose);
    # b_ref: (1, tn); o_ref: (tm, tn) f32 -- doubles as the accumulator since
    # its block index is K-invariant (stays resident across the K axis).
    k = pl.program_id(2)

    @pl.when(k == 0)
    def _():
        o_ref[...] = jnp.zeros_like(o_ref)

    o_ref[...] += lax.dot_general(
        x_ref[...], w_ref[...],
        dimension_numbers=(((1,), (1,)), ((), ())),
        preferred_element_type=jnp.float32,
    )

    @pl.when(k == pl.num_programs(2) - 1)
    def _():
        # Bias added exactly once, on the final K step.
        o_ref[...] += b_ref[...]


def _linear_kernel_acc(x_ref, w_ref, b_ref, o_ref, acc_ref):
    # Same contraction, but with an explicit f32 accumulator when the output
    # dtype is not f32 (keeps accumulation exact, single downcast at the end).
    k = pl.program_id(2)

    @pl.when(k == 0)
    def _():
        acc_ref[...] = jnp.zeros_like(acc_ref)

    acc_ref[...] += lax.dot_general(
        x_ref[...], w_ref[...],
        dimension_numbers=(((1,), (1,)), ((), ())),
        preferred_element_type=jnp.float32,
    )

    @pl.when(k == pl.num_programs(2) - 1)
    def _():
        o_ref[...] = (acc_ref[...] + b_ref[...]).astype(o_ref.dtype)


@functools.partial(jax.jit, static_argnames=("tm", "tn", "tk"))
def basic_forward(x, weight, bias, *, tm=512, tn=512, tk=1024):
    """Equivalent of `basic.forward`: nn.Linear(in_channels, out_channels)(x)."""
    M, K = x.shape
    N, K2 = weight.shape
    assert K == K2 and bias.shape == (N,)
    out_dtype = x.dtype

    # Small-batch regime: purely weight-streaming bound -> fewer, larger N/K
    # tiles so the weight is read with minimal grid steps.
    if M <= 256:
        tn = max(tn, 1024)
        tk = max(tk, 2048)

    # Per-dim tiling: use the full (unpadded) dim as the block whenever it fits
    # the max tile (satisfies the (8,128) rule with no pad / slice); otherwise
    # use an aligned tile and zero-pad that dim (exact: zeros contribute 0).
    if M <= tm:
        tm_eff, Mp = M, M
    else:
        tm_eff, Mp = tm, _round_up(M, tm)
    if K <= tk:
        tk_eff, Kp = K, K
    else:
        tk_eff, Kp = tk, _round_up(K, tk)
    if N <= tn:
        tn_eff, Np = N, N
    else:
        tn_eff, Np = tn, _round_up(N, tn)

    xp = x if (Mp, Kp) == (M, K) else jnp.pad(x, ((0, Mp - M), (0, Kp - K)))
    wp = weight if (Np, Kp) == (N, K) else jnp.pad(
        weight, ((0, Np - N), (0, Kp - K)))
    bp = bias.reshape(1, N)
    if Np != N:
        bp = jnp.pad(bp, ((0, 0), (0, Np - N)))

    grid = (Mp // tm_eff, Np // tn_eff, Kp // tk_eff)

    in_specs = [
        pl.BlockSpec((tm_eff, tk_eff), lambda i, j, k: (i, k)),
        # Weight kept in PyTorch (N, K) layout: tile directly over (j, k).
        pl.BlockSpec((tn_eff, tk_eff), lambda i, j, k: (j, k)),
        pl.BlockSpec((1, tn_eff), lambda i, j, k: (0, j)),
    ]
    out_spec = pl.BlockSpec((tm_eff, tn_eff), lambda i, j, k: (i, j))
    cparams = pltpu.CompilerParams(
        dimension_semantics=("parallel", "parallel", "arbitrary"),
        vmem_limit_bytes=48 * 1024 * 1024,
    )

    if out_dtype == jnp.float32:
        out_padded = pl.pallas_call(
            _linear_kernel_f32,
            out_shape=jax.ShapeDtypeStruct((Mp, Np), out_dtype),
            grid=grid,
            in_specs=in_specs,
            out_specs=out_spec,
            compiler_params=cparams,
        )(xp, wp, bp)
    else:
        out_padded = pl.pallas_call(
            _linear_kernel_acc,
            out_shape=jax.ShapeDtypeStruct((Mp, Np), out_dtype),
            grid=grid,
            in_specs=in_specs,
            out_specs=out_spec,
            scratch_shapes=[pltpu.VMEM((tm_eff, tn_eff), jnp.float32)],
            compiler_params=cparams,
        )(xp, wp, bp)

    if (Mp, Np) != (M, N):
        out_padded = out_padded[:M, :N]
    return out_padded


if __name__ == "__main__":
    key = jax.random.PRNGKey(0)
    k_x, k_w, k_b = jax.random.split(key, 3)

    batch = 8
    in_channels = 32
    out_channels = 16

    x = jax.random.normal(k_x, (batch, in_channels), dtype=jnp.float32)
    # Deterministic init mimicking nn.Linear's uniform(-1/sqrt(fan_in), 1/sqrt(fan_in))
    bound = 1.0 / (in_channels ** 0.5)
    weight = jax.random.uniform(
        k_w, (out_channels, in_channels), dtype=jnp.float32,
        minval=-bound, maxval=bound)
    bias = jax.random.uniform(
        k_b, (out_channels,), dtype=jnp.float32, minval=-bound, maxval=bound)

    out = basic_forward(x, weight, bias)
    jax.block_until_ready(out)

    # Correctness check against plain-JAX reference.
    ref = x @ weight.T + bias
    assert out.shape == (batch, out_channels)
    assert jnp.allclose(out, ref, atol=1e-5, rtol=1e-5)

    print("KERNEL_OK")
</pallas_src>

<mosaic_0001>
module attributes {stable_mosaic.version = 11 : i64} {
  func.func @_linear_kernel_f32(%arg0: i32, %arg1: i32, %arg2: i32, %arg3: memref<8x32xf32, #tpu.memory_space<vmem>>, %arg4: memref<16x32xf32, #tpu.memory_space<vmem>>, %arg5: memref<1x16xf32, #tpu.memory_space<vmem>>, %arg6: memref<8x16xf32, #tpu.memory_space<vmem>>) attributes {dimension_semantics = [#tpu.dimension_semantics<parallel>, #tpu.dimension_semantics<parallel>, #tpu.dimension_semantics<arbitrary>], iteration_bounds = array<i64: 1, 1, 1>, scalar_prefetch = 0 : i64, scratch_operands = 0 : i64, tpu.core_type = #tpu.core_type<tc>, window_params = [{transform_indices = @transform_0, window_bounds = array<i64: 8, 32>}, {transform_indices = @transform_1, window_bounds = array<i64: 16, 32>}, {transform_indices = @transform_2, window_bounds = array<i64: 1, 16>}, {transform_indices = @transform_3, window_bounds = array<i64: 8, 16>}]} {
    %c0_i32 = arith.constant 0 : i32
    %0 = arith.cmpi eq, %arg2, %c0_i32 : i32
    %1 = arith.extui %0 : i1 to i32
    %c0_i32_0 = arith.constant 0 : i32
    %2 = arith.cmpi ne, %1, %c0_i32_0 : i32
    scf.if %2 {
      %cst_10 = arith.constant 0.000000e+00 : f32
      %12 = vector.broadcast %cst_10 : f32 to vector<8x16xf32>
      %c0_11 = arith.constant 0 : index
      %c0_12 = arith.constant 0 : index
      %13 = vector.load %arg6[%c0_11, %c0_12] : memref<8x16xf32, #tpu.memory_space<vmem>>, vector<8x16xf32>
      tpu.vector_store %arg6[%c0_11, %c0_12], %12 {strides = array<i32>} : memref<8x16xf32, #tpu.memory_space<vmem>>, vector<8x16xf32>,
    } else {
    }
    %c0 = arith.constant 0 : index
    %c0_1 = arith.constant 0 : index
    %3 = vector.load %arg6[%c0, %c0_1] : memref<8x16xf32, #tpu.memory_space<vmem>>, vector<8x16xf32>
    %c0_2 = arith.constant 0 : index
    %c0_3 = arith.constant 0 : index
    %4 = vector.load %arg3[%c0_2, %c0_3] : memref<8x32xf32, #tpu.memory_space<vmem>>, vector<8x32xf32>
    %c0_4 = arith.constant 0 : index
    %c0_5 = arith.constant 0 : index
    %5 = vector.load %arg4[%c0_4, %c0_5] : memref<16x32xf32, #tpu.memory_space<vmem>>, vector<16x32xf32>
    %cst = arith.constant dense<0.000000e+00> : vector<8x16xf32>
    %6 = tpu.matmul %4, %5, %cst {dimension_numbers = #tpu.dot_dimension_numbers<[1], [1], [0], [0], [0, 0, 1, 0], [], []>} : vector<8x32xf32>, vector<16x32xf32>, vector<8x16xf32> -> vector<8x16xf32>
    %7 = arith.addf %3, %6 : vector<8x16xf32>
    %c0_6 = arith.constant 0 : index
    %c0_7 = arith.constant 0 : index
    %8 = vector.load %arg6[%c0_6, %c0_7] : memref<8x16xf32, #tpu.memory_space<vmem>>, vector<8x16xf32>
    tpu.vector_store %arg6[%c0_6, %c0_7], %7 {strides = array<i32>} : memref<8x16xf32, #tpu.memory_space<vmem>>, vector<8x16xf32>,
    %c0_i32_8 = arith.constant 0 : i32
    %9 = arith.cmpi eq, %arg2, %c0_i32_8 : i32
    %10 = arith.extui %9 : i1 to i32
    %c0_i32_9 = arith.constant 0 : i32
    %11 = arith.cmpi ne, %10, %c0_i32_9 : i32
    scf.if %11 {
      %c0_10 = arith.constant 0 : index
      %c0_11 = arith.constant 0 : index
      %12 = vector.load %arg6[%c0_10, %c0_11] : memref<8x16xf32, #tpu.memory_space<vmem>>, vector<8x16xf32>
      %c0_12 = arith.constant 0 : index
      %c0_13 = arith.constant 0 : index
      %13 = vector.load %arg5[%c0_12, %c0_13] : memref<1x16xf32, #tpu.memory_space<vmem>>, vector<1x16xf32>
      %14 = vector.broadcast %13 : vector<1x16xf32> to vector<8x16xf32>
      %15 = arith.addf %12, %14 : vector<8x16xf32>
      %c0_14 = arith.constant 0 : index
      %c0_15 = arith.constant 0 : index
      %16 = vector.load %arg6[%c0_14, %c0_15] : memref<8x16xf32, #tpu.memory_space<vmem>>, vector<8x16xf32>
      tpu.vector_store %arg6[%c0_14, %c0_15], %15 {strides = array<i32>} : memref<8x16xf32, #tpu.memory_space<vmem>>, vector<8x16xf32>,
    } else {
    }
    return
  }
  func.func @transform_0(%arg0: i32, %arg1: i32, %arg2: i32) -> (i32, i32) {
    %c0_i32 = arith.constant 0 : i32
    return %arg0, %arg2 : i32, i32
  }
  func.func @transform_1(%arg0: i32, %arg1: i32, %arg2: i32) -> (i32, i32) {
    %c0_i32 = arith.constant 0 : i32
    return %arg1, %arg2 : i32, i32
  }
  func.func @transform_2(%arg0: i32, %arg1: i32, %arg2: i32) -> (i32, i32) {
    %c0_i32 = arith.constant 0 : i32
    %c0_i32_0 = arith.constant 0 : i32
    return %c0_i32, %arg1 : i32, i32
  }
  func.func @transform_3(%arg0: i32, %arg1: i32, %arg2: i32) -> (i32, i32) {
    %c0_i32 = arith.constant 0 : i32
    return %arg0, %arg1 : i32, i32
  }
}

</mosaic_0001>

<llo_original>
// kernel: basic_forward.1
$region0: #{basic_forward.1}
  #allocation0 [shape = 'u32[]', space=smem, size = 0x4, offset = 0x4, fixed_abs, tag = 'smem constant byte address 0x4 - core index']
  #allocation1 [shape = 'u32[72,128]{1,0:T(1,128)}', space=vmem, size = 0x9000, scoped, tag = 'internal scratch']
  %s0 = inlined_call_operand.hbm [shape: f32[8,32], index: 0, kind: input, shape index: {}]
  %s1 = inlined_call_operand.hbm [shape: f32[16,32], index: 1, kind: input, shape index: {}]
  %s2 = inlined_call_operand.vmem [shape: f32[1,16], index: 2, kind: input, shape index: {}]
  %s3 = inlined_call_operand.hbm [shape: f32[8,16], index: 3, kind: output, shape index: {}]
  %s4 = sld [smem:[#allocation0]]
  $region38: #{basic_forward.1} parent=0
    _
  %s6 = ssub.s32 1, %s4
  %s7 = scalar_select 0, %s6, %s4
  $region1: #{basic_forward.1} parent=0
    #allocation2 [shape = 'u8[4096]{0}', space=vmem, size = 0x1000, scoped, tag = 'input window, operand 0, single buffered']
    #allocation3 [shape = 's32[1]{0}', space=sflag, size = 0x4, scoped, tag = 'scoped memory for basic_forward.1']
    #allocation4 [shape = 's32[1]{0}', space=sflag, size = 0x4, scoped, tag = 'scoped memory for basic_forward.1']
    #allocation5 [shape = 'u8[8192]{0}', space=vmem, size = 0x2000, scoped, tag = 'input window, operand 1, single buffered']
    #allocation6 [shape = 's32[1]{0}', space=sflag, size = 0x4, scoped, tag = 'scoped memory for basic_forward.1']
    #allocation7 [shape = 'u8[4096]{0}', space=vmem, size = 0x1000, scoped, tag = 'output window, operand 0, single buffered']
    %8 = vsyncpa [#allocation3], 0
    %9 = vsyncpa [#allocation6], 0
    %10 = vsyncpa [#allocation4], 0
    // Predicated region
    $region2: #{basic_forward.1} parent=1 // pred_check
      _
    $region3: #{basic_forward.1} parent=1 // pred_check_branch
      %12 = sbr.rel (0) target = $region5
    $region4: #{basic_forward.1} parent=1 // pred_region
      %14 = vsyncadd [#allocation3], 0
      %s16 = sshll.u32 %s0, 4
      %s17 = int_to_ptr.hbm [resolvable:$true] %s16
      %s18 = sshll.u32 [#allocation2], 4
      %s19 = int_to_ptr.vmem [resolvable:$true] %s18
      %21 = dma.hbm_to_vmem [thread:$0]  %s17, 128, %s19, [#allocation3]
    $region5: #{basic_forward.1} parent=1 // pred_fallthru
      _
    // Predicated region
    $region6: #{basic_forward.1} parent=1 // pred_check
      _
    $region7: #{basic_forward.1} parent=1 // pred_check_branch
      %23 = sbr.rel (0) target = $region9
    $region8: #{basic_forward.1} parent=1 // pred_region
      %25 = vsyncadd [#allocation6], 0
      %s26 = sshll.u32 %s1, 4
      %s27 = int_to_ptr.hbm [resolvable:$true] %s26
      %s28 = sshll.u32 [#allocation5], 4
      %s29 = int_to_ptr.vmem [resolvable:$true] %s28
      %34 = dma.hbm_to_vmem [thread:$0]  %s27, 256, %s29, [#allocation6], 128, 128, 8
    $region9: #{basic_forward.1} parent=1 // pred_fallthru
      _
    // Predicated region
    $region10: #{basic_forward.1} parent=1 // pred_check
      _
    $region11: #{basic_forward.1} parent=1 // pred_check_branch
      %36 = sbr.rel (0) target = $region13
    $region12: #{basic_forward.1} parent=1 // pred_region
      _
    $region13: #{basic_forward.1} parent=1 // pred_fallthru
      _
    // Predicated region
    $region14: #{basic_forward.1} parent=1 // pred_check
      _
    $region15: #{basic_forward.1} parent=1 // pred_check_branch
      %38 = sbr.rel (0) target = $region17
    $region16: #{basic_forward.1} parent=1 // pred_region
      %40 = dma.done [#allocation3], 128
    $region17: #{basic_forward.1} parent=1 // pred_fallthru
      _
    // Predicated region
    $region18: #{basic_forward.1} parent=1 // pred_check
      _
    $region19: #{basic_forward.1} parent=1 // pred_check_branch
      %42 = sbr.rel (0) target = $region21
    $region20: #{basic_forward.1} parent=1 // pred_region
      %44 = dma.done [#allocation6], 256
    $region21: #{basic_forward.1} parent=1 // pred_fallthru
      _
    %p45 = scmp.eq.s32.totalorder 0, 0
    // Predicated region
    $region22: #{basic_forward.1} parent=1 // pred_check
      %p46 = pneg %p45
    $region23: #{basic_forward.1} parent=1 // pred_check_branch
      %48 = sbr.rel (%p46) target = $region25
    $region24: #{basic_forward.1} parent=1 // pred_region
      %vm49 = vcmask 130048
      %50 = vst.msk [vmem:[#allocation7] sm:$0xff] %vm49, 0.0
    $region25: #{basic_forward.1} parent=1 // pred_fallthru
      _
    %v51 = vld [vmem:[#allocation7] sm:$0xff]
    %v52 = vld [vmem:[#allocation2] sm:$0xff]
    %v53 = vld [vmem:[#allocation5] sm:$0xff]
    %v54 = vld [vmem:[#allocation5 + $0x8] sm:$0xff]
    %vm55 = vcmask 261120
    %v57 = vsel %vm55, %v52, 0
    %v60 = vsel %vm55, %v53, 0
    %v63 = vsel %vm55, %v54, 0
    %65 = vmatpush.xpose.msra.mxu0 0.0
    %66 = vmatpush.xpose.msra.mxu0 0.0
    %67 = vmatpush.xpose.msra.mxu0 0.0
    %68 = vmatpush.xpose.msra.mxu0 0.0
    %69 = vmatpush.xpose.msra.mxu0 0.0
    %70 = vmatpush.xpose.msra.mxu0 0.0
    %71 = vmatpush.xpose.msra.mxu0 0.0
    %72 = vmatpush.xpose.msra.mxu0 0.0
    %73 = vmatpush.xpose.msra.mxu0 0.0
    %74 = vmatpush.xpose.msra.mxu0 0.0
    %75 = vmatpush.xpose.msra.mxu0 0.0
    %76 = vmatpush.xpose.msra.mxu0 0.0
    %77 = vmatpush.xpose.msra.mxu0 0.0
    %78 = vmatpush.xpose.msra.mxu0 0.0
    %79 = vmatpush.xpose.msra.mxu0 %v63
    %80 = vmatpush.xpose.msra.mxu0 %v60
    %81 = vmatmul.f32.gmra.mxu0 %v57
    %v82 = vpop.f32.mrf.mxu0
    %v83 = vadd.f32 0.0, %v82
    %84 = vdwg.mxu0
    %v85 = vadd.f32 %v51, %v83
    %vm86 = vcmask 130048
    %87 = vst.msk [vmem:[#allocation7] sm:$0xff] %vm86, %v85
    // Predicated region
    $region26: #{basic_forward.1} parent=1 // pred_check
      %p88 = pneg %p45
    $region27: #{basic_forward.1} parent=1 // pred_check_branch
      %90 = sbr.rel (%p88) target = $region29
    $region28: #{basic_forward.1} parent=1 // pred_region
      %v91 = vld [vmem:[#allocation7] sm:$0xff]
      %v92 = vld [vmem:[%s2] sm:$0x1]
      %v94 = vperm.slane %v92, 0
      %v96 = vadd.f32 %v91, %v94
      %97 = vst.msk [vmem:[#allocation7] sm:$0xff] %vm86, %v96
    $region29: #{basic_forward.1} parent=1 // pred_fallthru
      _
    // Predicated region
    $region30: #{basic_forward.1} parent=1 // pred_check
      _
    $region31: #{basic_forward.1} parent=1 // pred_check_branch
      %99 = sbr.rel (0) target = $region33
    $region32: #{basic_forward.1} parent=1 // pred_region
      %101 = vsyncadd [#allocation4], 0
      %s103 = sshll.u32 [#allocation7], 4
      %s104 = int_to_ptr.vmem [resolvable:$true] %s103
      %s105 = sshll.u32 %s3, 4
      %s106 = int_to_ptr.hbm [resolvable:$true] %s105
      %108 = dma.vmem_to_hbm [thread:$0]  %s104, 128, %s106, [#allocation4]
    $region33: #{basic_forward.1} parent=1 // pred_fallthru
      _
    // Predicated region
    $region34: #{basic_forward.1} parent=1 // pred_check
      _
    $region35: #{basic_forward.1} parent=1 // pred_check_branch
      %110 = sbr.rel (0) target = $region37
    $region36: #{basic_forward.1} parent=1 // pred_region
      %112 = dma.done [#allocation4], 128
    $region37: #{basic_forward.1} parent=1 // pred_fallthru
      _
    %113 = vsyncpa [#allocation3], 1
    %114 = vsyncpa [#allocation6], 1
    %115 = vsyncpa [#allocation4], 1

</llo_original>
